<compile_context>
chip_gen: v7x
topology: tpu7x:2x2x1
jax: 0.10.0
libtpu: 0.0.40
codegen_flags: <defaults>
</compile_context>

<pallas_src>
import math
import functools

import jax
import jax.numpy as jnp
from jax.experimental import pallas as pl
from jax.experimental.pallas import tpu as pltpu


def _round_up(x, m):
    return (x + m - 1) // m * m


def _self_attn_kernel(inv_sqrt_h, h_pad, o_pad, out_dim,
                      x_ref, w_ref, b_ref, o_ref):
    """One grid step = Tb sequences.
    x_ref: (Tb, N, D) input dtype; w_ref: (D, 2*Hp+Op) bf16; b_ref: (1, 2*Hp+Op) f32;
    o_ref: (Tb, N, out_dim) input dtype."""
    tb, n, d = x_ref.shape

    # In-kernel cast to bf16 (no wrapper-side pad/cast HBM pass); flatten the
    # batch tile so the fused QKV projection is one big-M MXU pass.
    x = x_ref[...].reshape(tb * n, d).astype(jnp.bfloat16)          # (Tb*N, D)

    # Fused QKV projection: single MXU pass, f32 accumulation, f32 bias add.
    qkv = jnp.dot(x, w_ref[...], preferred_element_type=jnp.float32) + b_ref[...]

    # Lane-aligned (128-multiple) slices of the fused projection.
    q = qkv[:, :h_pad].reshape(tb, n, h_pad)                        # (Tb, N, Hp) f32
    k = qkv[:, h_pad:2 * h_pad].reshape(tb, n, h_pad)               # (Tb, N, Hp) f32
    v = qkv[:, 2 * h_pad:2 * h_pad + o_pad].reshape(tb, n, o_pad)   # (Tb, N, Op) f32

    # Scores: batched contraction over the last axes (no k.T / XLU transpose),
    # bf16 MXU inputs, f32 accumulation.
    s = jnp.einsum('bqd,bkd->bqk',
                   q.astype(jnp.bfloat16), k.astype(jnp.bfloat16),
                   preferred_element_type=jnp.float32)              # (Tb, N, N) f32

    # Softmax in f32; post-softmax 1/sqrt(H) scale (faithful to the reference)
    # folded into the (approx, EUP) reciprocal of the row sums.
    s_max = jnp.max(s, axis=-1, keepdims=True)
    e = jnp.exp(s - s_max)
    denom = jnp.sum(e, axis=-1, keepdims=True)
    p = e * (pl.reciprocal(denom, approx=True) * inv_sqrt_h)        # (Tb, N, N) f32

    # Weighted sum of values (bf16 MXU inputs, f32 accumulation).
    out = jnp.einsum('bqk,bkd->bqd',
                     p.astype(jnp.bfloat16), v.astype(jnp.bfloat16),
                     preferred_element_type=jnp.float32)            # (Tb, N, Op) f32

    # Drop the zero-padded value lanes in-VMEM and store the real output width.
    o_ref[...] = out[..., :out_dim].astype(o_ref.dtype)


def _fuse_and_pad_params(params, hidden_dim, output_dim):
    """Concatenate Wq|Wk|Wv into one weight. Column sections are zero-padded to
    multiples of 128 lanes so the q/k/v slices are lane-aligned; the contraction
    dim (input_dim) is left unpadded. Weight in bf16, bias in f32."""
    wq, bq, wk, bk, wv, bv = params
    h_p = _round_up(hidden_dim, 128)
    o_p = _round_up(output_dim, 128)

    def pad_cols(a, cols):
        return jnp.pad(a, ((0, 0), (0, cols - a.shape[1])))

    w_f = jnp.concatenate(
        [pad_cols(wq, h_p), pad_cols(wk, h_p), pad_cols(wv, o_p)], axis=1)
    b_f = jnp.concatenate(
        [pad_cols(bq, h_p), pad_cols(bk, h_p), pad_cols(bv, o_p)], axis=1)
    return w_f.astype(jnp.bfloat16), b_f.astype(jnp.float32), h_p, o_p


def _choose_batch_tile(batch, seq_len):
    """Pick how many sequences one grid step processes."""
    # Target >= ~512 MXU/DMA rows per step to amortize per-step overhead.
    target_rows = 512
    tb = max(1, min(batch, target_rows // max(seq_len, 1)))
    # Keep the grid length >= 2 when possible so both v7x TensorCores get work
    # under dimension_semantics=("parallel",).
    if batch >= 2:
        tb = min(tb, max(1, (batch + 1) // 2))
    # Bound the Tb*N*N f32 score/exp temporaries (conservative for v7x 64 MiB VMEM).
    score_budget = 24 * 1024 * 1024
    tb = min(tb, max(1, score_budget // max(1, 3 * seq_len * seq_len * 4)))
    return tb


def self_attention_forward(x, seq_lens, params, hidden_dim, *, batch_tile=None):
    """Wrapper calling the Pallas kernel. `seq_lens` accepted (API parity with the
    PyTorch module) but unused by the reference forward. Accepts x of shape
    (N, D) or a batch of sequences (B, N, D)."""
    del seq_lens  # unused in the reference forward (no masking)

    squeeze = (x.ndim == 2)
    if squeeze:
        x = x[None]
    B, N, D = x.shape

    wq, bq, wk, bk, wv, bv = params
    output_dim = wv.shape[1]

    w_f, b_f, h_p, o_p = _fuse_and_pad_params(params, hidden_dim, output_dim)
    f_p = w_f.shape[1]

    tb = batch_tile if batch_tile is not None else _choose_batch_tile(B, N)
    grid_b = pl.cdiv(B, tb)
    b_pad = grid_b * tb
    if b_pad != B:
        # Pad the batch with zero sequences; their (garbage but finite) outputs
        # are sliced off below.
        x = jnp.pad(x, ((0, b_pad - B), (0, 0), (0, 0)))

    kernel = functools.partial(_self_attn_kernel,
                               1.0 / math.sqrt(hidden_dim), h_p, o_p, output_dim)

    itemsize = x.dtype.itemsize
    flops = b_pad * N * (2 * D * f_p) + b_pad * (2 * N * N * h_p + 2 * N * N * o_p)
    bytes_accessed = (x.size * itemsize + w_f.size * 2 + b_f.size * 4
                      + b_pad * N * output_dim * itemsize)
    cost = pl.CostEstimate(flops=flops,
                           transcendentals=b_pad * N * N,
                           bytes_accessed=bytes_accessed)

    # Explicit scoped-VMEM budget: double-buffered x/out blocks + resident
    # (double-buffered) weight/bias + f32 qkv / score / exp / p / acc temporaries.
    vmem_needed = (
        2 * tb * N * D * itemsize                 # x blocks
        + 2 * tb * N * output_dim * itemsize      # out blocks
        + 2 * (w_f.size * 2 + b_f.size * 4)       # weight + bias
        + tb * N * f_p * 4                        # qkv f32
        + 3 * tb * N * N * 4                      # scores / exp / p
        + tb * N * o_p * 4                        # p @ v accumulator
    )
    vmem_limit = int(min(64 * 1024 * 1024,
                         max(16 * 1024 * 1024, 2 * vmem_needed)))

    out = pl.pallas_call(
        kernel,
        out_shape=jax.ShapeDtypeStruct((b_pad, N, output_dim), x.dtype),
        grid=(grid_b,),
        in_specs=[
            pl.BlockSpec((tb, N, D), lambda b: (b, 0, 0)),   # Tb sequences per step
            pl.BlockSpec((D, f_p), lambda b: (0, 0)),        # fused weight (grid-invariant)
            pl.BlockSpec((1, f_p), lambda b: (0, 0)),        # fused bias (grid-invariant)
        ],
        out_specs=pl.BlockSpec((tb, N, output_dim), lambda b: (b, 0, 0)),
        compiler_params=pltpu.CompilerParams(
            dimension_semantics=("parallel",),               # megacore / v7x 2-TC sharding
            vmem_limit_bytes=vmem_limit),
        cost_estimate=cost,
    )(x, w_f, b_f)

    if b_pad != B:
        out = out[:B]
    if squeeze:
        out = out[0]
    return out


def init_params(key, input_dim, hidden_dim, output_dim):
    """Deterministic parameter init mimicking nn.Linear's uniform(-1/sqrt(fan_in), ...).
    Weights are stored as (in_features, out_features)."""
    ks = jax.random.split(key, 6)
    bound = 1.0 / math.sqrt(input_dim)

    def u(k, shape):
        return jax.random.uniform(k, shape, jnp.float32, -bound, bound)

    wq = u(ks[0], (input_dim, hidden_dim))
    bq = u(ks[1], (1, hidden_dim))
    wk = u(ks[2], (input_dim, hidden_dim))
    bk = u(ks[3], (1, hidden_dim))
    wv = u(ks[4], (input_dim, output_dim))
    bv = u(ks[5], (1, output_dim))
    return (wq, bq, wk, bk, wv, bv)


def reference_forward(x, params, hidden_dim):
    """Pure-JAX (f32) reference for sanity checking; works on (N,D) or (B,N,D)."""
    wq, bq, wk, bk, wv, bv = params
    q = x @ wq + bq
    k = x @ wk + bk
    v = x @ wv + bv
    s = jax.nn.softmax(q @ jnp.swapaxes(k, -1, -2), axis=-1) / math.sqrt(hidden_dim)
    return s @ v


if __name__ == "__main__":
    input_dim, hidden_dim, output_dim = 32, 32, 32
    batch, seq_len = 4, 8

    key = jax.random.PRNGKey(0)
    k_x, k_p = jax.random.split(key)

    x = jax.random.normal(k_x, (batch, seq_len, input_dim), jnp.float32)
    seq_lens = jnp.full((batch,), seq_len, dtype=jnp.int32)  # unused, API parity
    params = init_params(k_p, input_dim, hidden_dim, output_dim)

    out = self_attention_forward(x, seq_lens, params, hidden_dim)
    out = jax.block_until_ready(out)

    ref = reference_forward(x, params, hidden_dim)
    assert out.shape == (batch, seq_len, output_dim)
    # bf16 matmul operands + approx reciprocal => small numeric deviation vs f32 ref.
    assert jnp.allclose(out, ref, atol=2e-2, rtol=2e-2)

    print("KERNEL_OK")
</pallas_src>

<mosaic_0001>
module attributes {stable_mosaic.version = 11 : i64} {
  func.func @_self_attn_kernel(%arg0: i32, %arg1: memref<2x8x32xf32, #tpu.memory_space<vmem>>, %arg2: memref<32x384xbf16, #tpu.memory_space<vmem>>, %arg3: memref<1x384xf32, #tpu.memory_space<vmem>>, %arg4: memref<2x8x32xf32, #tpu.memory_space<vmem>>) attributes {dimension_semantics = [#tpu.dimension_semantics<parallel>], iteration_bounds = array<i64: 2>, scalar_prefetch = 0 : i64, scratch_operands = 0 : i64, tpu.core_type = #tpu.core_type<tc>, window_params = [{transform_indices = @transform_0, window_bounds = array<i64: 2, 8, 32>}, {pipeline_mode = #tpu.pipeline_mode<synchronous>, transform_indices = @transform_1, window_bounds = array<i64: 32, 384>}, {pipeline_mode = #tpu.pipeline_mode<synchronous>, transform_indices = @transform_2, window_bounds = array<i64: 1, 384>}, {transform_indices = @transform_3, window_bounds = array<i64: 2, 8, 32>}]} {
    %c0 = arith.constant 0 : index
    %c0_0 = arith.constant 0 : index
    %c0_1 = arith.constant 0 : index
    %0 = vector.load %arg1[%c0, %c0_0, %c0_1] : memref<2x8x32xf32, #tpu.memory_space<vmem>>, vector<2x8x32xf32>
    %1 = vector.shape_cast %0 : vector<2x8x32xf32> to vector<16x32xf32>
    %2 = arith.truncf %1 : vector<16x32xf32> to vector<16x32xbf16>
    %c0_2 = arith.constant 0 : index
    %c0_3 = arith.constant 0 : index
    %3 = vector.load %arg2[%c0_2, %c0_3] : memref<32x384xbf16, #tpu.memory_space<vmem>>, vector<32x384xbf16>
    %cst = arith.constant dense<0.000000e+00> : vector<16x384xf32>
    %4 = tpu.matmul %2, %3, %cst {dimension_numbers = #tpu.dot_dimension_numbers<[1], [0], [0], [1], [0, 0, 1, 1], [], []>} : vector<16x32xbf16>, vector<32x384xbf16>, vector<16x384xf32> -> vector<16x384xf32>
    %c0_4 = arith.constant 0 : index
    %c0_5 = arith.constant 0 : index
    %5 = vector.load %arg3[%c0_4, %c0_5] : memref<1x384xf32, #tpu.memory_space<vmem>>, vector<1x384xf32>
    %6 = vector.broadcast %5 : vector<1x384xf32> to vector<16x384xf32>
    %7 = arith.addf %4, %6 : vector<16x384xf32>
    %8 = vector.extract_strided_slice %7 {offsets = [0, 0], sizes = [16, 128], strides = [1, 1]} : vector<16x384xf32> to vector<16x128xf32>
    %9 = vector.shape_cast %8 : vector<16x128xf32> to vector<2x8x128xf32>
    %10 = vector.extract_strided_slice %7 {offsets = [0, 128], sizes = [16, 128], strides = [1, 1]} : vector<16x384xf32> to vector<16x128xf32>
    %11 = vector.shape_cast %10 : vector<16x128xf32> to vector<2x8x128xf32>
    %12 = vector.extract_strided_slice %7 {offsets = [0, 256], sizes = [16, 128], strides = [1, 1]} : vector<16x384xf32> to vector<16x128xf32>
    %13 = vector.shape_cast %12 : vector<16x128xf32> to vector<2x8x128xf32>
    %14 = arith.truncf %9 : vector<2x8x128xf32> to vector<2x8x128xbf16>
    %15 = arith.truncf %11 : vector<2x8x128xf32> to vector<2x8x128xbf16>
    "tpu.trace_start"() <{level = 10 : i32, message = "bqd,bkd->bqk"}> : () -> ()
    %cst_6 = arith.constant dense<0.000000e+00> : vector<2x8x8xf32>
    %16 = tpu.matmul %14, %15, %cst_6 {dimension_numbers = #tpu.dot_dimension_numbers<[2], [2], [1], [1], [0, 0, 0, 1, 1, 1], [0], [0]>} : vector<2x8x128xbf16>, vector<2x8x128xbf16>, vector<2x8x8xf32> -> vector<2x8x8xf32>
    "tpu.trace_stop"() : () -> ()
    %cst_7 = arith.constant dense<0xFF800000> : vector<2x8xf32>
    %17 = vector.multi_reduction <maximumf>, %16, %cst_7 [2] : vector<2x8x8xf32> to vector<2x8xf32>
    %18 = vector.shape_cast %17 : vector<2x8xf32> to vector<2x8x1xf32>
    %19 = vector.broadcast %18 : vector<2x8x1xf32> to vector<2x8x8xf32>
    %20 = arith.subf %16, %19 : vector<2x8x8xf32>
    %21 = math.exp %20 : vector<2x8x8xf32>
    %cst_8 = arith.constant dense<0.000000e+00> : vector<2x8xf32>
    %22 = vector.multi_reduction <add>, %21, %cst_8 [2] : vector<2x8x8xf32> to vector<2x8xf32>
    %23 = vector.shape_cast %22 : vector<2x8xf32> to vector<2x8x1xf32>
    %24 = tpu.reciprocal %23 {approx = true} : vector<2x8x1xf32> -> vector<2x8x1xf32>
    %cst_9 = arith.constant 0.176776692 : f32
    %25 = vector.broadcast %cst_9 : f32 to vector<2x8x1xf32>
    %26 = arith.mulf %24, %25 : vector<2x8x1xf32>
    %27 = vector.broadcast %26 : vector<2x8x1xf32> to vector<2x8x8xf32>
    %28 = arith.mulf %21, %27 : vector<2x8x8xf32>
    %29 = arith.truncf %28 : vector<2x8x8xf32> to vector<2x8x8xbf16>
    %30 = arith.truncf %13 : vector<2x8x128xf32> to vector<2x8x128xbf16>
    "tpu.trace_start"() <{level = 10 : i32, message = "bqk,bkd->bqd"}> : () -> ()
    %cst_10 = arith.constant dense<0.000000e+00> : vector<2x8x128xf32>
    %31 = tpu.matmul %29, %30, %cst_10 {dimension_numbers = #tpu.dot_dimension_numbers<[2], [1], [1], [2], [0, 0, 0, 1, 1, 2], [0], [0]>} : vector<2x8x8xbf16>, vector<2x8x128xbf16>, vector<2x8x128xf32> -> vector<2x8x128xf32>
    "tpu.trace_stop"() : () -> ()
    %32 = vector.extract_strided_slice %31 {offsets = [0, 0, 0], sizes = [2, 8, 32], strides = [1, 1, 1]} : vector<2x8x128xf32> to vector<2x8x32xf32>
    %c0_11 = arith.constant 0 : index
    %c0_12 = arith.constant 0 : index
    %c0_13 = arith.constant 0 : index
    %33 = vector.load %arg4[%c0_11, %c0_12, %c0_13] : memref<2x8x32xf32, #tpu.memory_space<vmem>>, vector<2x8x32xf32>
    tpu.vector_store %arg4[%c0_11, %c0_12, %c0_13], %32 {strides = array<i32>} : memref<2x8x32xf32, #tpu.memory_space<vmem>>, vector<2x8x32xf32>,
    return
  }
  func.func @transform_0(%arg0: i32) -> (i32, i32, i32) {
    %c0_i32 = arith.constant 0 : i32
    %c0_i32_0 = arith.constant 0 : i32
    %c0_i32_1 = arith.constant 0 : i32
    return %arg0, %c0_i32, %c0_i32_0 : i32, i32, i32
  }
  func.func @transform_1(%arg0: i32) -> (i32, i32) {
    %c0_i32 = arith.constant 0 : i32
    %c0_i32_0 = arith.constant 0 : i32
    %c0_i32_1 = arith.constant 0 : i32
    return %c0_i32, %c0_i32_0 : i32, i32
  }
  func.func @transform_2(%arg0: i32) -> (i32, i32) {
    %c0_i32 = arith.constant 0 : i32
    %c0_i32_0 = arith.constant 0 : i32
    %c0_i32_1 = arith.constant 0 : i32
    return %c0_i32, %c0_i32_0 : i32, i32
  }
  func.func @transform_3(%arg0: i32) -> (i32, i32, i32) {
    %c0_i32 = arith.constant 0 : i32
    %c0_i32_0 = arith.constant 0 : i32
    %c0_i32_1 = arith.constant 0 : i32
    return %arg0, %c0_i32, %c0_i32_0 : i32, i32, i32
  }
}

</mosaic_0001>

<llo_original>
// kernel: tpu_custom_call.1
$region0: #{tpu_custom_call.1}
  #allocation0 [shape = 'u32[]', space=smem, size = 0x4, offset = 0x4, fixed_abs, tag = 'smem constant byte address 0x4 - core index']
  #allocation1 [shape = 'u32[144,128]{1,0:T(1,128)}', space=vmem, size = 0x12000, scoped, tag = 'internal scratch']
  %s0 = inlined_call_operand.hbm [shape: f32[4,8,32], index: 0, kind: input, shape index: {}]
  %s1 = inlined_call_operand.hbm [shape: bf16[32,384], index: 1, kind: input, shape index: {}]
  %s2 = inlined_call_operand.vmem [shape: f32[1,384], index: 2, kind: input, shape index: {}]
  %s3 = inlined_call_operand.hbm [shape: f32[4,8,32], index: 3, kind: output, shape index: {}]
  %s4 = sld [smem:[#allocation0]]
  $region53: #{tpu_custom_call.1} parent=0
    _
  %s6 = ssub.s32 1, %s4
  %s7 = scalar_select 0, %s6, %s4
  $region1: #{tpu_custom_call.1} parent=0
    #allocation2 [shape = 'u8[16384]{0}', space=vmem, size = 0x4000, scoped, tag = 'input window, operand 0']
    #allocation3 [shape = 's32[2]{0}', space=sflag, size = 0x8, scoped, tag = 'scoped memory for tpu_custom_call.1']
    #allocation4 [shape = 's32[2]{0}', space=sflag, size = 0x8, scoped, tag = 'scoped memory for tpu_custom_call.1']
    #allocation5 [shape = 'u8[24576]{0}', space=vmem, size = 0x6000, scoped, tag = 'input window, operand 1, single buffered']
    #allocation6 [shape = 's32[1]{0}', space=sflag, size = 0x4, scoped, tag = 'scoped memory for tpu_custom_call.1']
    #allocation7 [shape = 'u8[16384]{0}', space=vmem, size = 0x4000, scoped, tag = 'output window, operand 0']
    %8 = vsyncpa [#allocation3], 0
    %s9 = scalar_lea.sflag [#allocation3], 1
    %10 = vsyncpa %s9, 0
    %11 = vsyncpa [#allocation6], 0
    %12 = vsyncpa [#allocation4], 0
    %s13 = scalar_lea.sflag [#allocation4], 1
    %14 = vsyncpa %s13, 0
    loop: start=0, step=1, limit=4
    $region2: #{tpu_custom_call.1} parent=1 // loop_pre_header
      _
    $region3: #{tpu_custom_call.1} parent=1 // loop_header
      %s16 = sphi 0, %s20
      %p17 = scmp.ge.s32.totalorder %s16, 4
      %s26 = sphi 0, %s28
      %s29 = sphi 0, %s26
      %s30 = sphi 0, %s29
      %s46 = sphi 0, %s30
      %s50 = sphi 0, %s50
      %s52 = sphi 0, %s50
      %s53 = sphi 0, %s52
      %s67 = sphi 0, %s53
      %s71 = sphi 0, %s71
      %s73 = sphi 0, %s71
      %s74 = sphi 0, %s73
      %s88 = sphi 0, %s74
      %s94 = sphi 0, %s96
      %s97 = sphi 0, %s94
      %s98 = sphi 0, %s97
      %s114 = sphi 0, %s98
    $region4: #{tpu_custom_call.1} parent=1 // loop_header_branch
      %19 = sbr.rel (%p17) target = $region8
    $region5: #{tpu_custom_call.1} parent=1 // loop_body
      %s21 = ssub.s32 %s16, 1
      %s22 = ssub.s32 %s16, 2
      %s23 = sadd.s32 %s16, 1
      %s24 = ssub.s32 %s16, %s23
      %p25 = scmp.eq.s32.totalorder %s24, 0
      %s27 = sadd.s32 %s26, 1
      %s28 = scalar_select %p25, %s26, %s27
      %p31 = pneg %p25
      %p32 = scmp.eq.s32.totalorder %s16, 1
      %p33 = por %p31, %p32
      %p34 = scmp.ne.s32.totalorder %s26, %s29
      %p35 = scmp.eq.s32.totalorder %s16, 0
      %p36 = por %p34, %p35
      %p37 = scmp.ne.s32.totalorder %s26, %s29
      %p38 = scmp.eq.s32.totalorder %s21, 1
      %p39 = por %p37, %p38
      %p40 = scmp.ne.s32.totalorder %s29, %s30
      %p41 = scmp.eq.s32.totalorder %s21, 0
      %p42 = por %p40, %p41
      %p43 = scmp.ne.s32.totalorder %s29, %s30
      %p44 = scmp.eq.s32.totalorder %s22, 1
      %p45 = por %p43, %p44
      %p47 = scmp.ne.s32.totalorder %s30, %s46
      %p48 = scmp.eq.s32.totalorder %s22, 0
      %p49 = por %p47, %p48
      %s51 = sadd.s32 %s50, 1
      %p54 = scmp.eq.s32.totalorder %s16, 1
      %p55 = scmp.ne.s32.totalorder %s50, %s52
      %p56 = scmp.eq.s32.totalorder %s16, 0
      %p57 = por %p55, %p56
      %p58 = scmp.ne.s32.totalorder %s50, %s52
      %p59 = scmp.eq.s32.totalorder %s21, 1
      %p60 = por %p58, %p59
      %p61 = scmp.ne.s32.totalorder %s52, %s53
      %p62 = scmp.eq.s32.totalorder %s21, 0
      %p63 = por %p61, %p62
      %p64 = scmp.ne.s32.totalorder %s52, %s53
      %p65 = scmp.eq.s32.totalorder %s22, 1
      %p66 = por %p64, %p65
      %p68 = scmp.ne.s32.totalorder %s53, %s67
      %p69 = scmp.eq.s32.totalorder %s22, 0
      %p70 = por %p68, %p69
      %s72 = sadd.s32 %s71, 1
      %p75 = scmp.eq.s32.totalorder %s16, 1
      %p76 = scmp.ne.s32.totalorder %s71, %s73
      %p77 = scmp.eq.s32.totalorder %s16, 0
      %p78 = por %p76, %p77
      %p79 = scmp.ne.s32.totalorder %s71, %s73
      %p80 = scmp.eq.s32.totalorder %s21, 1
      %p81 = por %p79, %p80
      %p82 = scmp.ne.s32.totalorder %s73, %s74
      %p83 = scmp.eq.s32.totalorder %s21, 0
      %p84 = por %p82, %p83
      %p85 = scmp.ne.s32.totalorder %s73, %s74
      %p86 = scmp.eq.s32.totalorder %s22, 1
      %p87 = por %p85, %p86
      %p89 = scmp.ne.s32.totalorder %s74, %s88
      %p90 = scmp.eq.s32.totalorder %s22, 0
      %p91 = por %p89, %p90
      %s92 = ssub.s32 %s16, %s23
      %p93 = scmp.eq.s32.totalorder %s92, 0
      %s95 = sadd.s32 %s94, 1
      %s96 = scalar_select %p93, %s94, %s95
      %p99 = pneg %p93
      %p100 = scmp.eq.s32.totalorder %s16, 1
      %p101 = por %p99, %p100
      %p102 = scmp.ne.s32.totalorder %s94, %s97
      %p103 = scmp.eq.s32.totalorder %s16, 0
      %p104 = por %p102, %p103
      %p105 = scmp.ne.s32.totalorder %s94, %s97
      %p106 = scmp.eq.s32.totalorder %s21, 1
      %p107 = por %p105, %p106
      %p108 = scmp.ne.s32.totalorder %s97, %s98
      %p109 = scmp.eq.s32.totalorder %s21, 0
      %p110 = por %p108, %p109
      %p111 = scmp.ne.s32.totalorder %s97, %s98
      %p112 = scmp.eq.s32.totalorder %s22, 1
      %p113 = por %p111, %p112
      %p115 = scmp.ne.s32.totalorder %s98, %s114
      %p116 = scmp.eq.s32.totalorder %s22, 0
      %p117 = por %p115, %p116
      %p118 = scmp.le.s32.totalorder 1, %s16
      %p119 = scmp.lt.s32.totalorder %s16, 3
      %p120 = pnand %p118, %p119
      %p121 = pneg %p120
      // Predicated region
      $region9: #{tpu_custom_call.1} parent=5 // pred_check
        _
      $region10: #{tpu_custom_call.1} parent=5 // pred_check_branch
        %123 = sbr.rel (%p120) target = $region12
      $region11: #{tpu_custom_call.1} parent=5 // pred_region
        %s124 = ssub.s32 %s16, 1
        // Predicated region
        $region13: #{tpu_custom_call.1} parent=11 // pred_check
          %p125 = pneg %p63
        $region14: #{tpu_custom_call.1} parent=11 // pred_check_branch
          %127 = sbr.rel (%p125) target = $region16
        $region15: #{tpu_custom_call.1} parent=11 // pred_region
          %s129 = ssub.s32 768, 768
          %130 = vsyncadd [#allocation6], %s129
          %s131 = sshll.u32 [#allocation5], 4
          %s132 = int_to_ptr.vmem [resolvable:$true] %s131
          %137 = dma.hbm_to_vmem [thread:$0]  %s1, 768, %s132, [#allocation6], 192, 192, 12
        $region16: #{tpu_custom_call.1} parent=11 // pred_fallthru
          _
        // Predicated region
        $region17: #{tpu_custom_call.1} parent=11 // pred_check
          %p138 = pneg %p84
        $region18: #{tpu_custom_call.1} parent=11 // pred_check_branch
          %140 = sbr.rel (%p138) target = $region20
        $region19: #{tpu_custom_call.1} parent=11 // pred_region
          _
        $region20: #{tpu_custom_call.1} parent=11 // pred_fallthru
          _
      $region12: #{tpu_custom_call.1} parent=5 // pred_fallthru
        _
      %p141 = scmp.lt.s32.totalorder %s16, 2
      // Predicated region
      $region21: #{tpu_custom_call.1} parent=5 // pred_check
        %p142 = pneg %p141
      $region22: #{tpu_custom_call.1} parent=5 // pred_check_branch
        %144 = sbr.rel (%p142) target = $region24
      $region23: #{tpu_custom_call.1} parent=5 // pred_region
        // Predicated region
        $region25: #{tpu_custom_call.1} parent=23 // pred_check
          %p145 = pneg %p36
        $region26: #{tpu_custom_call.1} parent=23 // pred_check_branch
          %147 = sbr.rel (%p145) target = $region28
        $region27: #{tpu_custom_call.1} parent=23 // pred_region
          %s148 = sand.u32 %s26, 1
          %s149 = scalar_lea.sflag [#allocation3], %s148
          %s150 = sand.u32 %s26, 1
          %s151 = smul.addr %s150, 16
          %s152 = scalar_lea.vmem [#allocation2], %s151
          %s153 = smul.u32 2, %s16
          %s155 = ssub.s32 256, 256
          %156 = vsyncadd %s149, %s155
          %s157 = smul.addr %s153, 128
          %s158 = scalar_lea.hbm %s0, %s157
          %s159 = sshll.u32 %s152, 4
          %s160 = int_to_ptr.vmem [resolvable:$true] %s159
          %165 = dma.hbm_to_vmem [thread:$0]  %s158, 256, %s160, %s149, 128, 128, 8
        $region28: #{tpu_custom_call.1} parent=23 // pred_fallthru
          _
      $region24: #{tpu_custom_call.1} parent=5 // pred_fallthru
        _
      %p166 = scmp.le.s32.totalorder 1, %s16
      %p167 = scmp.lt.s32.totalorder %s16, 3
      %p168 = pnand %p166, %p167
      %p169 = pneg %p168
      // Predicated region
      $region29: #{tpu_custom_call.1} parent=5 // pred_check
        _
      $region30: #{tpu_custom_call.1} parent=5 // pred_check_branch
        %171 = sbr.rel (%p168) target = $region32
      $region31: #{tpu_custom_call.1} parent=5 // pred_region
        %s172 = ssub.s32 %s16, 1
        %s173 = sand.u32 %s29, 1
        %s174 = scalar_lea.sflag [#allocation3], %s173
        %s175 = sand.u32 %s29, 1
        %s176 = smul.addr %s175, 16
        %s177 = scalar_lea.vmem [#allocation2], %s176
        // Predicated region
        $region33: #{tpu_custom_call.1} parent=31 // pred_check
          %p178 = pneg %p42
        $region34: #{tpu_custom_call.1} parent=31 // pred_check_branch
          %180 = sbr.rel (%p178) target = $region36
        $region35: #{tpu_custom_call.1} parent=31 // pred_region
          %181 = dma.done %s174, 256
        $region36: #{tpu_custom_call.1} parent=31 // pred_fallthru
          _
        // Predicated region
        $region37: #{tpu_custom_call.1} parent=31 // pred_check
          %p182 = pneg %p63
        $region38: #{tpu_custom_call.1} parent=31 // pred_check_branch
          %184 = sbr.rel (%p182) target = $region40
        $region39: #{tpu_custom_call.1} parent=31 // pred_region
          %185 = dma.done [#allocation6], 768
        $region40: #{tpu_custom_call.1} parent=31 // pred_fallthru
          _
        %s186 = sand.u32 %s29, 1
        %s187 = scalar_lea.sflag [#allocation3], %s186
        %s188 = sand.u32 %s29, 1
        %s189 = smul.addr %s188, 16
        %s190 = scalar_lea.vmem [#allocation2], %s189
        %p191 = pneg %p42
        %p192 = pneg %p39
        %p193 = pneg %p63
        %p194 = pneg %p60
        %p195 = pneg %p84
        %p196 = pneg %p81
        %p197 = pneg %p110
        %p198 = pneg %p107
        %s199 = sand.u32 %s97, 1
        %s200 = scalar_lea.sflag [#allocation4], %s199
        %s201 = sand.u32 %s97, 1
        %s202 = smul.addr %s201, 16
        %s203 = scalar_lea.vmem [#allocation7], %s202
        %s204 = smul.u32 2, %s21
        %s205 = smul.u32 2, %s21
        %v207 = vld [vmem:[%s177] sm:$0xff]
        %v208 = vld [vmem:[%s177 + $0x8] sm:$0xff]
        %v209 = vpack.c.bf16 %v208, %v207
        %v210 = vld [vmem:[#allocation5] sm:$0xff]
        %v211 = vld [vmem:[#allocation5 + $0x8] sm:$0xf]
        %v212 = vld [vmem:[#allocation5 + $0xc] sm:$0xff]
        %v213 = vld [vmem:[#allocation5 + $0x14] sm:$0xf]
        %v214 = vld [vmem:[#allocation5 + $0x18] sm:$0xff]
        %v215 = vld [vmem:[#allocation5 + $0x20] sm:$0xf]
        %v216 = vld [vmem:[#allocation5 + $0x24] sm:$0xff]
        %v217 = vld [vmem:[#allocation5 + $0x2c] sm:$0xf]
        %v218 = vld [vmem:[%s2] sm:$0x7]
        %v220 = vlaneseq
        %v221 = vshrl.u32 %v220, 7
        %v222 = vsub.s32 0, %v221
        %v223 = vrot.slane %v218, %v222
        %v224 = vlaneseq
        %v225 = vshrl.u32 %v224, 7
        %v226 = vsub.s32 1, %v225
        %v227 = vrot.slane %v218, %v226
        %v228 = vlaneseq
        %v229 = vshrl.u32 %v228, 7
        %v230 = vsub.s32 2, %v229
        %v231 = vrot.slane %v218, %v230
        %v243 = vunpack.c.l.b16 %v210
        %v244 = vunpack.c.h.b16 %v210
        %v245 = vunpack.c.l.b16 %v211
        %v246 = vunpack.c.l.b16 %v212
        %v247 = vunpack.c.h.b16 %v212
        %v248 = vunpack.c.l.b16 %v213
        %v249 = vunpack.c.l.b16 %v214
        %v250 = vunpack.c.h.b16 %v214
        %v251 = vunpack.c.l.b16 %v215
        %v252 = vunpack.c.l.b16 %v216
        %v253 = vunpack.c.h.b16 %v216
        %v254 = vunpack.c.l.b16 %v217
        %v255 = vpack.c.b16 %v246, %v243
        %v256 = vpack.c.b16 %v247, %v244
        %v257 = vpack.c.b16 %v248, %v245
        %v258 = vpack.c.b16 %v252, %v249
        %v259 = vpack.c.b16 %v253, %v250
        %v260 = vpack.c.b16 %v254, %v251
        %vm267 = vcmask 261120
        %v269 = vsel %vm267, %v209, 0
        %271 = vmatprep.subr.bf16.mxu0 %v256
        %272 = vmatpush1.bf16.msra.mxu0 %v255
        %273 = vmatprep.subr.bf16.mxu0 %v259
        %274 = vmatpush1.bf16.msra.mxu0 %v258
        %275 = vmatprep.subr.bf16.mxu0 0
        %276 = vmatpush1.bf16.msra.mxu0 0
        %277 = vmatprep.subr.bf16.mxu0 0
        %278 = vmatpush1.bf16.msra.mxu0 0
        %279 = vmatprep.subr.bf16.mxu0 0
        %280 = vmatpush1.bf16.msra.mxu0 0
        %281 = vmatprep.subr.bf16.mxu0 0
        %282 = vmatpush1.bf16.msra.mxu0 0
        %283 = vmatprep.subr.bf16.mxu0 0
        %284 = vmatpush1.bf16.msra.mxu0 0
        %285 = vmatprep.subr.bf16.mxu0 0
        %286 = vmatpush1.bf16.msra.mxu0 0
        %287 = vmatprep.subr.bf16.mxu0 0
        %288 = vmatpush1.bf16.msra.mxu0 0
        %289 = vmatprep.subr.bf16.mxu0 0
        %290 = vmatpush1.bf16.msra.mxu0 0
        %291 = vmatprep.subr.bf16.mxu0 0
        %292 = vmatpush1.bf16.msra.mxu0 0
        %293 = vmatprep.subr.bf16.mxu0 0
        %294 = vmatpush1.bf16.msra.mxu0 0
        %295 = vmatprep.subr.bf16.mxu0 0
        %296 = vmatpush1.bf16.msra.mxu0 0
        %297 = vmatprep.subr.bf16.mxu0 0
        %298 = vmatpush1.bf16.msra.mxu0 0
        %299 = vmatprep.subr.bf16.mxu0 0
        %300 = vmatpush1.bf16.msra.mxu0 0
        %301 = vmatprep.subr.bf16.mxu0 0
        %302 = vmatpush1.bf16.msra.mxu0 0
        %303 = vmatprep.mubr.bf16.mxu0 0
        %304 = vmatmul.mubr.bf16.gmra.mrb[0].mxu0 %v269
        %v305 = vpop.f32.mrb[0].mxu0
        %v306 = vadd.f32 %v223, %v305
        %v307 = vpop.f32.mrb[0].mxu0
        %v308 = vadd.f32 %v227, %v307
        %v309 = vpop.f32.mrb[0].mxu0
        %v310 = vadd.f32 %v223, %v309
        %v311 = vpop.f32.mrb[0].mxu0
        %v312 = vadd.f32 %v227, %v311
        %313 = vdwg.mxu0
        %314 = vmatprep.subr.bf16.mxu0 0
        %315 = vmatpush1.bf16.msra.mxu0 %v257
        %316 = vmatprep.subr.bf16.mxu0 0
        %317 = vmatpush1.bf16.msra.mxu0 %v260
        %318 = vmatprep.subr.bf16.mxu0 0
        %319 = vmatpush1.bf16.msra.mxu0 0
        %320 = vmatprep.subr.bf16.mxu0 0
        %321 = vmatpush1.bf16.msra.mxu0 0
        %322 = vmatprep.subr.bf16.mxu0 0
        %323 = vmatpush1.bf16.msra.mxu0 0
        %324 = vmatprep.subr.bf16.mxu0 0
        %325 = vmatpush1.bf16.msra.mxu0 0
        %326 = vmatprep.subr.bf16.mxu0 0
        %327 = vmatpush1.bf16.msra.mxu0 0
        %328 = vmatprep.subr.bf16.mxu0 0
        %329 = vmatpush1.bf16.msra.mxu0 0
        %330 = vmatprep.subr.bf16.mxu0 0
        %331 = vmatpush1.bf16.msra.mxu0 0
        %332 = vmatprep.subr.bf16.mxu0 0
        %333 = vmatpush1.bf16.msra.mxu0 0
        %334 = vmatprep.subr.bf16.mxu0 0
        %335 = vmatpush1.bf16.msra.mxu0 0
        %336 = vmatprep.subr.bf16.mxu0 0
        %337 = vmatpush1.bf16.msra.mxu0 0
        %338 = vmatprep.subr.bf16.mxu0 0
        %339 = vmatpush1.bf16.msra.mxu0 0
        %340 = vmatprep.subr.bf16.mxu0 0
        %341 = vmatpush1.bf16.msra.mxu0 0
        %342 = vmatprep.subr.bf16.mxu0 0
        %343 = vmatpush1.bf16.msra.mxu0 0
        %344 = vmatprep.subr.bf16.mxu0 0
        %345 = vmatpush1.bf16.msra.mxu0 0
        %346 = vmatprep.mubr.bf16.mxu0 0
        %347 = vmatmul.mubr.bf16.gmra.mrb[0].mxu0 %v269
        %v348 = vpop.f32.mrb[0].mxu0
        %v349 = vadd.f32 %v231, %v348
        %v350 = vpop.f32.mrb[0].mxu0
        %v351 = vpop.f32.mrb[0].mxu0
        %v352 = vadd.f32 %v231, %v351
        %v353 = vpop.f32.mrb[0].mxu0
        %354 = vdwg.mxu0
        %v355 = vpack.c.bf16 %v306, %v306
        %v356 = vpack.c.bf16 %v310, %v310
        %v357 = vpack.c.bf16 %v308, %v308
        %v358 = vpack.c.bf16 %v312, %v312
        %359 = vmatprep.subr.bf16.mxu0 0
        %360 = vmatpush1.bf16.xpose.msra.mxu0 %v357
        %361 = vmatprep.subr.bf16.mxu0 0
        %362 = vmatpush1.bf16.xpose.msra.mxu0 0
        %363 = vmatprep.subr.bf16.mxu0 0
        %364 = vmatpush1.bf16.xpose.msra.mxu0 0
        %365 = vmatprep.subr.bf16.mxu0 0
        %366 = vmatpush1.bf16.xpose.msra.mxu0 0
        %367 = vmatprep.subr.bf16.mxu0 0
        %368 = vmatpush1.bf16.xpose.msra.mxu0 0
        %369 = vmatprep.subr.bf16.mxu0 0
        %370 = vmatpush1.bf16.xpose.msra.mxu0 0
        %371 = vmatprep.subr.bf16.mxu0 0
        %372 = vmatpush1.bf16.xpose.msra.mxu0 0
        %373 = vmatprep.subr.bf16.mxu0 0
        %374 = vmatpush1.bf16.xpose.msra.mxu0 0
        %375 = vmatprep.subr.bf16.mxu0 0
        %376 = vmatpush1.bf16.xpose.msra.mxu0 0
        %377 = vmatprep.subr.bf16.mxu0 0
        %378 = vmatpush1.bf16.xpose.msra.mxu0 0
        %379 = vmatprep.subr.bf16.mxu0 0
        %380 = vmatpush1.bf16.xpose.msra.mxu0 0
        %381 = vmatprep.subr.bf16.mxu0 0
        %382 = vmatpush1.bf16.xpose.msra.mxu0 0
        %383 = vmatprep.subr.bf16.mxu0 0
        %384 = vmatpush1.bf16.xpose.msra.mxu0 0
        %385 = vmatprep.subr.bf16.mxu0 0
        %386 = vmatpush1.bf16.xpose.msra.mxu0 0
        %387 = vmatprep.subr.bf16.mxu0 0
        %388 = vmatpush1.bf16.xpose.msra.mxu0 0
        %389 = vmatprep.subr.bf16.mxu0 0
        %390 = vmatpush1.bf16.xpose.msra.mxu0 0
        %391 = vmatprep.mubr.bf16.mxu0 0
        %392 = vmatmul.mubr.bf16.gmra.mrb[0].mxu0 %v355
        %v393 = vpop.f32.mrb[0].mxu0
        %v394 = vadd.f32 0.0, %v393
        %v395 = vpop.f32.mrb[0].mxu0
        %v396 = vpop.f32.mrb[0].mxu0
        %v397 = vpop.f32.mrb[0].mxu0
        %398 = vdwg.mxu0
        %399 = vmatprep.subr.bf16.mxu0 0
        %400 = vmatpush1.bf16.xpose.msra.mxu0 %v358
        %401 = vmatprep.subr.bf16.mxu0 0
        %402 = vmatpush1.bf16.xpose.msra.mxu0 0
        %403 = vmatprep.subr.bf16.mxu0 0
        %404 = vmatpush1.bf16.xpose.msra.mxu0 0
        %405 = vmatprep.subr.bf16.mxu0 0
        %406 = vmatpush1.bf16.xpose.msra.mxu0 0
        %407 = vmatprep.subr.bf16.mxu0 0
        %408 = vmatpush1.bf16.xpose.msra.mxu0 0
        %409 = vmatprep.subr.bf16.mxu0 0
        %410 = vmatpush1.bf16.xpose.msra.mxu0 0
        %411 = vmatprep.subr.bf16.mxu0 0
        %412 = vmatpush1.bf16.xpose.msra.mxu0 0
        %413 = vmatprep.subr.bf16.mxu0 0
        %414 = vmatpush1.bf16.xpose.msra.mxu0 0
        %415 = vmatprep.subr.bf16.mxu0 0
        %416 = vmatpush1.bf16.xpose.msra.mxu0 0
        %417 = vmatprep.subr.bf16.mxu0 0
        %418 = vmatpush1.bf16.xpose.msra.mxu0 0
        %419 = vmatprep.subr.bf16.mxu0 0
        %420 = vmatpush1.bf16.xpose.msra.mxu0 0
        %421 = vmatprep.subr.bf16.mxu0 0
        %422 = vmatpush1.bf16.xpose.msra.mxu0 0
        %423 = vmatprep.subr.bf16.mxu0 0
        %424 = vmatpush1.bf16.xpose.msra.mxu0 0
        %425 = vmatprep.subr.bf16.mxu0 0
        %426 = vmatpush1.bf16.xpose.msra.mxu0 0
        %427 = vmatprep.subr.bf16.mxu0 0
        %428 = vmatpush1.bf16.xpose.msra.mxu0 0
        %429 = vmatprep.subr.bf16.mxu0 0
        %430 = vmatpush1.bf16.xpose.msra.mxu0 0
        %431 = vmatprep.mubr.bf16.mxu0 0
        %432 = vmatmul.mubr.bf16.gmra.mrb[0].mxu0 %v356
        %v433 = vpop.f32.mrb[0].mxu0
        %v434 = vadd.f32 0.0, %v433
        %v435 = vpop.f32.mrb[0].mxu0
        %v436 = vpop.f32.mrb[0].mxu0
        %v437 = vpop.f32.mrb[0].mxu0
        %438 = vdwg.mxu0
        %vm439 = vcmask 64512
        %v440 = vsel %vm439, %v394, -inf
        %441 = vmax.xlane.f32.xlu0 %v440
        %v442 = vpop.xlane.xlu0 %441
        %v443 = vsel %vm439, %v434, -inf
        %444 = vmax.xlane.f32.xlu0 %v443
        %v445 = vpop.xlane.xlu0 %444
        %v446 = vsub.f32 %v394, %v442
        %v447 = vsub.f32 %v434, %v445
        %v448 = vmul.f32 %v446, 1.442695
        %v449 = vpow.pop %v448
        %v450 = vmul.f32 %v447, 1.442695
        %v451 = vpow.pop %v450
        %v452 = vsel %vm439, %v449, 0.0
        %453 = vadd.xlane.f32.xlu0 %v452
        %v454 = vpop.xlane.xlu0 %453
        %v455 = vsel %vm439, %v451, 0.0
        %456 = vadd.xlane.f32.xlu0 %v455
        %v457 = vpop.xlane.xlu0 %456
        %v458 = vrcp.pop %v454
        %v459 = vrcp.pop %v457
        %v460 = vmul.f32 %v458, 0.17677669
        %v461 = vmul.f32 %v459, 0.17677669
        %v462 = vmul.f32 %v449, %v460
        %v463 = vmul.f32 %v451, %v461
        %v464 = vpack.c.bf16 %v462, %v462
        %v465 = vpack.c.bf16 %v463, %v463
        %v466 = vpack.c.bf16 %v349, %v349
        %v467 = vpack.c.bf16 %v352, %v352
        %v469 = vsel %vm439, %v464, 0
        %vm471 = vcmask 1043456
        %v473 = vsel %vm471, %v466, 0
        %475 = vmatprep.subr.bf16.mxu0 0
        %476 = vmatpush1.bf16.msra.mxu0 %v473
        %477 = vmatprep.subr.bf16.mxu0 0
        %478 = vmatpush1.bf16.msra.mxu0 0
        %479 = vmatprep.subr.bf16.mxu0 0
        %480 = vmatpush1.bf16.msra.mxu0 0
        %481 = vmatprep.subr.bf16.mxu0 0
        %482 = vmatpush1.bf16.msra.mxu0 0
        %483 = vmatprep.subr.bf16.mxu0 0
        %484 = vmatpush1.bf16.msra.mxu0 0
        %485 = vmatprep.subr.bf16.mxu0 0
        %486 = vmatpush1.bf16.msra.mxu0 0
        %487 = vmatprep.subr.bf16.mxu0 0
        %488 = vmatpush1.bf16.msra.mxu0 0
        %489 = vmatprep.subr.bf16.mxu0 0
        %490 = vmatpush1.bf16.msra.mxu0 0
        %491 = vmatprep.subr.bf16.mxu0 0
        %492 = vmatpush1.bf16.msra.mxu0 0
        %493 = vmatprep.subr.bf16.mxu0 0
        %494 = vmatpush1.bf16.msra.mxu0 0
        %495 = vmatprep.subr.bf16.mxu0 0
        %496 = vmatpush1.bf16.msra.mxu0 0
        %497 = vmatprep.subr.bf16.mxu0 0
        %498 = vmatpush1.bf16.msra.mxu0 0
        %499 = vmatprep.subr.bf16.mxu0 0
        %500 = vmatpush1.bf16.msra.mxu0 0
        %501 = vmatprep.subr.bf16.mxu0 0
        %502 = vmatpush1.bf16.msra.mxu0 0
        %503 = vmatprep.subr.bf16.mxu0 0
        %504 = vmatpush1.bf16.msra.mxu0 0
        %505 = vmatprep.subr.bf16.mxu0 0
        %506 = vmatpush1.bf16.msra.mxu0 0
        %507 = vmatprep.mubr.bf16.mxu0 0
        %508 = vmatmul.mubr.bf16.gmra.mrb[0].mxu0 %v469
        %v509 = vpop.f32.mrb[0].mxu0
        %v510 = vadd.f32 0.0, %v509
        %v511 = vpop.f32.mrb[0].mxu0
        %v512 = vpop.f32.mrb[0].mxu0
        %v513 = vpop.f32.mrb[0].mxu0
        %514 = vdwg.mxu0
        %v516 = vsel %vm439, %v465, 0
        %v519 = vsel %vm471, %v467, 0
        %521 = vmatprep.subr.bf16.mxu0 0
        %522 = vmatpush1.bf16.msra.mxu0 %v519
        %523 = vmatprep.subr.bf16.mxu0 0
        %524 = vmatpush1.bf16.msra.mxu0 0
        %525 = vmatprep.subr.bf16.mxu0 0
        %526 = vmatpush1.bf16.msra.mxu0 0
        %527 = vmatprep.subr.bf16.mxu0 0
        %528 = vmatpush1.bf16.msra.mxu0 0
        %529 = vmatprep.subr.bf16.mxu0 0
        %530 = vmatpush1.bf16.msra.mxu0 0
        %531 = vmatprep.subr.bf16.mxu0 0
        %532 = vmatpush1.bf16.msra.mxu0 0
        %533 = vmatprep.subr.bf16.mxu0 0
        %534 = vmatpush1.bf16.msra.mxu0 0
        %535 = vmatprep.subr.bf16.mxu0 0
        %536 = vmatpush1.bf16.msra.mxu0 0
        %537 = vmatprep.subr.bf16.mxu0 0
        %538 = vmatpush1.bf16.msra.mxu0 0
        %539 = vmatprep.subr.bf16.mxu0 0
        %540 = vmatpush1.bf16.msra.mxu0 0
        %541 = vmatprep.subr.bf16.mxu0 0
        %542 = vmatpush1.bf16.msra.mxu0 0
        %543 = vmatprep.subr.bf16.mxu0 0
        %544 = vmatpush1.bf16.msra.mxu0 0
        %545 = vmatprep.subr.bf16.mxu0 0
        %546 = vmatpush1.bf16.msra.mxu0 0
        %547 = vmatprep.subr.bf16.mxu0 0
        %548 = vmatpush1.bf16.msra.mxu0 0
        %549 = vmatprep.subr.bf16.mxu0 0
        %550 = vmatpush1.bf16.msra.mxu0 0
        %551 = vmatprep.subr.bf16.mxu0 0
        %552 = vmatpush1.bf16.msra.mxu0 0
        %553 = vmatprep.mubr.bf16.mxu0 0
        %554 = vmatmul.mubr.bf16.gmra.mrb[0].mxu0 %v516
        %v555 = vpop.f32.mrb[0].mxu0
        %v556 = vadd.f32 0.0, %v555
        %v557 = vpop.f32.mrb[0].mxu0
        %v558 = vpop.f32.mrb[0].mxu0
        %v559 = vpop.f32.mrb[0].mxu0
        %560 = vdwg.mxu0
        %561 = vst.msk [vmem:[%s203] sm:$0xff] %vm267, %v510
        %562 = vst.msk [vmem:[%s203 + $0x8] sm:$0xff] %vm267, %v556
        %s563 = sand.u32 %s97, 1
        %s564 = scalar_lea.sflag [#allocation4], %s563
        %s565 = sand.u32 %s97, 1
        %s566 = smul.addr %s565, 16
        %s567 = scalar_lea.vmem [#allocation7], %s566
        // Predicated region
        $region41: #{tpu_custom_call.1} parent=31 // pred_check
          %p568 = pneg %p107
        $region42: #{tpu_custom_call.1} parent=31 // pred_check_branch
          %570 = sbr.rel (%p568) target = $region44
        $region43: #{tpu_custom_call.1} parent=31 // pred_region
          %s571 = smul.u32 2, %s21
          %s573 = ssub.s32 256, 256
          %574 = vsyncadd %s564, %s573
          %s575 = smul.addr %s571, 128
          %s576 = scalar_lea.hbm %s3, %s575
          %s577 = sshll.u32 %s567, 4
          %s578 = int_to_ptr.vmem [resolvable:$true] %s577
          %583 = dma.vmem_to_hbm [thread:$0]  %s578, 256, %s576, %s564, 128, 128, 8
        $region44: #{tpu_custom_call.1} parent=31 // pred_fallthru
          _
      $region32: #{tpu_custom_call.1} parent=5 // pred_fallthru
        _
      %p584 = scmp.le.s32.totalorder 2, %s16
      // Predicated region
      $region45: #{tpu_custom_call.1} parent=5 // pred_check
        %p585 = pneg %p584
      $region46: #{tpu_custom_call.1} parent=5 // pred_check_branch
        %587 = sbr.rel (%p585) target = $region48
      $region47: #{tpu_custom_call.1} parent=5 // pred_region
        %s588 = ssub.s32 %s16, 2
        // Predicated region
        $region49: #{tpu_custom_call.1} parent=47 // pred_check
          %p589 = pneg %p113
        $region50: #{tpu_custom_call.1} parent=47 // pred_check_branch
          %591 = sbr.rel (%p589) target = $region52
        $region51: #{tpu_custom_call.1} parent=47 // pred_region
          %s592 = sand.u32 %s98, 1
          %s593 = scalar_lea.sflag [#allocation4], %s592
          %s594 = sand.u32 %s98, 1
          %s595 = smul.addr %s594, 16
          %s596 = scalar_lea.vmem [#allocation7], %s595
          %597 = dma.done %s593, 256
        $region52: #{tpu_custom_call.1} parent=47 // pred_fallthru
          _
      $region48: #{tpu_custom_call.1} parent=5 // pred_fallthru
        _
    $region6: #{tpu_custom_call.1} parent=1 // loop_footer
      %s20 = sadd.s32 1, %s16
    $region7: #{tpu_custom_call.1} parent=1 // loop_footer_branch
      %15 = sbr.rel target = $region3
    $region8: #{tpu_custom_call.1} parent=1 // loop_exit
      _
    %598 = vsyncpa [#allocation3], 1
    %s599 = scalar_lea.sflag [#allocation3], 1
    %600 = vsyncpa %s599, 1
    %601 = vsyncpa [#allocation6], 1
    %602 = vsyncpa [#allocation4], 1
    %s603 = scalar_lea.sflag [#allocation4], 1
    %604 = vsyncpa %s603, 1

</llo_original>
